<compile_context>
chip_gen: v5e
topology: v5e:2x2
jax: 0.10.0
libtpu: 0.0.40
codegen_flags: <defaults>
</compile_context>

<pallas_src>
import functools

import jax
import jax.numpy as jnp
from jax.experimental import pallas as pl
from jax.experimental.pallas import tpu as pltpu


# ---------------------------------------------------------------------------
# Fused forward kernel (all matmuls + masked CE in one launch)
# ---------------------------------------------------------------------------
def _fused_forward_kernel(
    ids_ref, mask_ref, labels_ref,
    emb_ref, txt_w_ref, txt_b_ref,
    patches_ref, vis_w_ref, vis_b_ref,
    fus_wt_ref, fus_bt_ref, fus_wv_ref, fus_bv_ref,
    dec_w_ref, dec_b_ref, lora_a_ref, lora_b_ref,
    logits_ref, loss_ref,
    *, B, T, P, S, vocab,
):
    f32 = jnp.float32

    # ---- text encoder: embedding lookup as one-hot @ table (exact), linear+ReLU ----
    ids = ids_ref[...]                                              # (B*T, 1) int32
    iota_v = jax.lax.broadcasted_iota(jnp.int32, (B * T, vocab), 1)
    onehot = (iota_v == ids).astype(f32)                            # (B*T, vocab)
    tok = jnp.dot(onehot, emb_ref[...], preferred_element_type=f32)  # (B*T, d_txt)
    t = jnp.dot(tok, txt_w_ref[...], preferred_element_type=f32) + txt_b_ref[...]
    t = jnp.maximum(t, 0.0)                                         # (B*T, txt_out)
    fused_t = jnp.dot(t, fus_wt_ref[...], preferred_element_type=f32) + fus_bt_ref[...]

    # ---- vision encoder: patch tokens -> linear + ReLU -> fusion projection ----
    v = jnp.dot(patches_ref[...], vis_w_ref[...], preferred_element_type=f32) + vis_b_ref[...]
    v = jnp.maximum(v, 0.0)                                         # (B*P, vis_out)
    fused_v = jnp.dot(v, fus_wv_ref[...], preferred_element_type=f32) + fus_bv_ref[...]

    # ---- decoder: LoRA folded into the base weight once (W_eff = W + A @ B) ----
    w_eff = dec_w_ref[...] + jnp.dot(
        lora_a_ref[...], lora_b_ref[...], preferred_element_type=f32)
    logits_t = jnp.dot(fused_t, w_eff, preferred_element_type=f32) + dec_b_ref[...]  # (B*T, V)
    logits_v = jnp.dot(fused_v, w_eff, preferred_element_type=f32) + dec_b_ref[...]  # (B*P, V)

    # ---- "concat along seq axis": write per-batch text rows then vision rows
    #      into disjoint static row ranges of the single (B*S, V) logits buffer ----
    for b in range(B):  # static unroll (B is tiny)
        logits_ref[b * S: b * S + T, :] = logits_t[b * T:(b + 1) * T, :]
        logits_ref[b * S + T:(b + 1) * S, :] = logits_v[b * P:(b + 1) * P, :]

    # ---- masked cross-entropy on the VMEM-resident logits, reduced to a scalar ----
    z = logits_ref[...]                                             # (B*S, V) f32
    m = jnp.max(z, axis=-1, keepdims=True)
    lse = m + jnp.log(jnp.sum(jnp.exp(z - m), axis=-1, keepdims=True))
    viota = jax.lax.broadcasted_iota(jnp.int32, z.shape, 1)
    tgt = jnp.sum(jnp.where(viota == labels_ref[...], z, 0.0), axis=-1, keepdims=True)
    per_tok = lse - tgt                                             # (B*S, 1)
    mask = mask_ref[...]                                            # (B*S, 1) f32
    total = jnp.sum(per_tok * mask)
    denom = jnp.maximum(jnp.sum(mask), 1.0)
    loss_ref[0, 0] = total / denom                                  # scalar -> SMEM


# ---------------------------------------------------------------------------
# Model (parameter construction + forward; the whole hot path is one kernel)
# ---------------------------------------------------------------------------
def init_params(key, *, vocab_size, d_txt, txt_out, img_c, patch, vis_out,
                fusion_dim, dec_vocab, lora_rank):
    ks = jax.random.split(key, 12)
    p = {}
    p["txt_embed"] = jax.random.normal(ks[0], (vocab_size, d_txt), jnp.float32) * 0.02
    p["txt_w"] = jax.random.normal(ks[1], (d_txt, txt_out), jnp.float32) * 0.05
    p["txt_b"] = jnp.zeros((1, txt_out), jnp.float32)
    patch_dim = img_c * patch * patch
    p["vis_w"] = jax.random.normal(ks[2], (patch_dim, vis_out), jnp.float32) * 0.05
    p["vis_b"] = jnp.zeros((1, vis_out), jnp.float32)
    p["fus_wt"] = jax.random.normal(ks[3], (txt_out, fusion_dim), jnp.float32) * 0.05
    p["fus_bt"] = jnp.zeros((1, fusion_dim), jnp.float32)
    p["fus_wv"] = jax.random.normal(ks[4], (vis_out, fusion_dim), jnp.float32) * 0.05
    p["fus_bv"] = jnp.zeros((1, fusion_dim), jnp.float32)
    p["dec_w"] = jax.random.normal(ks[5], (fusion_dim, dec_vocab), jnp.float32) * 0.05
    p["dec_b"] = jnp.zeros((1, dec_vocab), jnp.float32)
    p["lora_a"] = jax.random.normal(ks[6], (fusion_dim, lora_rank), jnp.float32) * 0.05
    p["lora_b"] = jnp.zeros((lora_rank, dec_vocab), jnp.float32)  # standard LoRA init B=0
    return p


def multimodal_forward(params, text_inputs, image_inputs, labels, *, patch):
    input_ids = text_inputs["input_ids"]             # (B, T) int32
    text_attention = text_inputs["attention_mask"]   # (B, T) int32
    B, T = input_ids.shape
    Bi, C, H, W = image_inputs.shape
    ph, pw = H // patch, W // patch
    P = ph * pw
    S = T + P
    vocab = params["txt_embed"].shape[0]
    dec_vocab = params["dec_w"].shape[1]

    # Patchify NCHW -> (B*P, C*p*p). Layout-only; kept as an XLA transpose.
    # TODO(synk): pure layout prep (transpose/reshape) stays outside the kernel.
    patches = image_inputs.reshape(Bi, C, ph, patch, pw, patch)
    patches = jnp.transpose(patches, (0, 2, 4, 1, 3, 5))
    patches = patches.reshape(Bi * P, C * patch * patch)

    # Tiny scalar/mask glue (ints, a few hundred bytes).
    ids2d = input_ids.reshape(B * T, 1).astype(jnp.int32)
    vision_attention = jnp.ones((B, P), jnp.int32)
    fused_attention = jnp.concatenate(
        [text_attention.astype(jnp.int32), vision_attention], axis=1)   # (B, S)
    mask2d = fused_attention.reshape(B * S, 1).astype(jnp.float32)
    labels2d = labels.reshape(B * S, 1).astype(jnp.int32)

    kernel = functools.partial(_fused_forward_kernel,
                               B=B, T=T, P=P, S=S, vocab=vocab)
    logits_flat, loss2d = pl.pallas_call(
        kernel,
        out_shape=(jax.ShapeDtypeStruct((B * S, dec_vocab), jnp.float32),
                   jax.ShapeDtypeStruct((1, 1), jnp.float32)),
        in_specs=[pl.BlockSpec(memory_space=pltpu.VMEM)] * 17,
        out_specs=(pl.BlockSpec(memory_space=pltpu.VMEM),
                   pl.BlockSpec(memory_space=pltpu.SMEM)),
    )(ids2d, mask2d, labels2d,
      params["txt_embed"], params["txt_w"], params["txt_b"],
      patches, params["vis_w"], params["vis_b"],
      params["fus_wt"], params["fus_bt"], params["fus_wv"], params["fus_bv"],
      params["dec_w"], params["dec_b"], params["lora_a"], params["lora_b"])

    logits = logits_flat.reshape(B, S, dec_vocab)   # bitcast reshape, no copy
    loss = loss2d[0, 0]
    return loss, logits


# ---------------------------------------------------------------------------
# Main
# ---------------------------------------------------------------------------
if __name__ == "__main__":
    # Small config consistent with the module's forward.
    B = 2
    T = 8              # text sequence length
    VOCAB = 64         # text vocab
    D_TXT = 32         # text embedding dim
    TXT_OUT = 32       # text encoder output_dim
    C, H, W = 4, 16, 16
    PATCH = 8          # -> P = 4 vision tokens
    VIS_OUT = 32       # vision encoder output_dim
    FUSION_DIM = 32    # fusion_cfg['output_dim']
    DEC_VOCAB = 64     # decoder_cfg['output_dim']
    LORA_RANK = 4      # decoder_cfg['lora']

    key = jax.random.PRNGKey(0)
    k_img, k_ids, k_lab, k_par = jax.random.split(key, 4)

    image_inputs = jax.random.normal(k_img, (B, C, H, W), jnp.float32)   # NCHW
    input_ids = jax.random.randint(k_ids, (B, T), 0, VOCAB, jnp.int32)
    # attention mask: last 2 text tokens of batch element 1 are padding
    attn = jnp.ones((B, T), jnp.int32).at[1, T - 2:].set(0)
    text_inputs = {"input_ids": input_ids, "attention_mask": attn}

    S = T + (H // PATCH) * (W // PATCH)
    labels = jax.random.randint(k_lab, (B, S), 0, DEC_VOCAB, jnp.int32)

    params = init_params(k_par, vocab_size=VOCAB, d_txt=D_TXT, txt_out=TXT_OUT,
                         img_c=C, patch=PATCH, vis_out=VIS_OUT,
                         fusion_dim=FUSION_DIM, dec_vocab=DEC_VOCAB,
                         lora_rank=LORA_RANK)

    fwd = jax.jit(functools.partial(multimodal_forward, patch=PATCH))
    loss, logits = fwd(params, text_inputs, image_inputs, labels)
    jax.block_until_ready((loss, logits))

    print(logits.shape)   # mirrors `print(logits.shape)` in the PyTorch forward
    assert logits.shape == (B, S, DEC_VOCAB)
    assert jnp.isfinite(loss)
    print("KERNEL_OK")
</pallas_src>

<mosaic_0001>
module attributes {stable_mosaic.version = 11 : i64} {
  func.func @_fused_forward_kernel(%arg0: memref<16x1xi32, #tpu.memory_space<vmem>>, %arg1: memref<24x1xf32, #tpu.memory_space<vmem>>, %arg2: memref<24x1xi32, #tpu.memory_space<vmem>>, %arg3: memref<64x32xf32, #tpu.memory_space<vmem>>, %arg4: memref<32x32xf32, #tpu.memory_space<vmem>>, %arg5: memref<1x32xf32, #tpu.memory_space<vmem>>, %arg6: memref<8x256xf32, #tpu.memory_space<vmem>>, %arg7: memref<256x32xf32, #tpu.memory_space<vmem>>, %arg8: memref<1x32xf32, #tpu.memory_space<vmem>>, %arg9: memref<32x32xf32, #tpu.memory_space<vmem>>, %arg10: memref<1x32xf32, #tpu.memory_space<vmem>>, %arg11: memref<32x32xf32, #tpu.memory_space<vmem>>, %arg12: memref<1x32xf32, #tpu.memory_space<vmem>>, %arg13: memref<32x64xf32, #tpu.memory_space<vmem>>, %arg14: memref<1x64xf32, #tpu.memory_space<vmem>>, %arg15: memref<32x4xf32, #tpu.memory_space<vmem>>, %arg16: memref<4x64xf32, #tpu.memory_space<vmem>>, %arg17: memref<24x64xf32, #tpu.memory_space<vmem>>, %arg18: memref<1x1xf32, #tpu.memory_space<smem>>) attributes {dimension_semantics = [], scalar_prefetch = 0 : i64, scratch_operands = 0 : i64, tpu.core_type = #tpu.core_type<tc>} {
    %c0 = arith.constant 0 : index
    %c0_0 = arith.constant 0 : index
    %0 = vector.load %arg0[%c0, %c0_0] : memref<16x1xi32, #tpu.memory_space<vmem>>, vector<16x1xi32>
    %1 = tpu.iota {dimensions = array<i32: 1>} : vector<16x64xi32>
    %2 = vector.broadcast %0 : vector<16x1xi32> to vector<16x64xi32>
    %3 = arith.cmpi eq, %1, %2 : vector<16x64xi32>
    %4 = arith.extui %3 : vector<16x64xi1> to vector<16x64xi32>
    %5 = arith.sitofp %4 : vector<16x64xi32> to vector<16x64xf32>
    %c0_1 = arith.constant 0 : index
    %c0_2 = arith.constant 0 : index
    %6 = vector.load %arg3[%c0_1, %c0_2] : memref<64x32xf32, #tpu.memory_space<vmem>>, vector<64x32xf32>
    %cst = arith.constant dense<0.000000e+00> : vector<16x32xf32>
    %7 = tpu.matmul %5, %6, %cst {dimension_numbers = #tpu.dot_dimension_numbers<[1], [0], [0], [1], [0, 0, 1, 1], [], []>} : vector<16x64xf32>, vector<64x32xf32>, vector<16x32xf32> -> vector<16x32xf32>
    %c0_3 = arith.constant 0 : index
    %c0_4 = arith.constant 0 : index
    %8 = vector.load %arg4[%c0_3, %c0_4] : memref<32x32xf32, #tpu.memory_space<vmem>>, vector<32x32xf32>
    %cst_5 = arith.constant dense<0.000000e+00> : vector<16x32xf32>
    %9 = tpu.matmul %7, %8, %cst_5 {dimension_numbers = #tpu.dot_dimension_numbers<[1], [0], [0], [1], [0, 0, 1, 1], [], []>} : vector<16x32xf32>, vector<32x32xf32>, vector<16x32xf32> -> vector<16x32xf32>
    %c0_6 = arith.constant 0 : index
    %c0_7 = arith.constant 0 : index
    %10 = vector.load %arg5[%c0_6, %c0_7] : memref<1x32xf32, #tpu.memory_space<vmem>>, vector<1x32xf32>
    %11 = vector.broadcast %10 : vector<1x32xf32> to vector<16x32xf32>
    %12 = arith.addf %9, %11 : vector<16x32xf32>
    %cst_8 = arith.constant 0.000000e+00 : f32
    %13 = vector.broadcast %cst_8 : f32 to vector<16x32xf32>
    %14 = arith.maximumf %12, %13 : vector<16x32xf32>
    %c0_9 = arith.constant 0 : index
    %c0_10 = arith.constant 0 : index
    %15 = vector.load %arg9[%c0_9, %c0_10] : memref<32x32xf32, #tpu.memory_space<vmem>>, vector<32x32xf32>
    %cst_11 = arith.constant dense<0.000000e+00> : vector<16x32xf32>
    %16 = tpu.matmul %14, %15, %cst_11 {dimension_numbers = #tpu.dot_dimension_numbers<[1], [0], [0], [1], [0, 0, 1, 1], [], []>} : vector<16x32xf32>, vector<32x32xf32>, vector<16x32xf32> -> vector<16x32xf32>
    %c0_12 = arith.constant 0 : index
    %c0_13 = arith.constant 0 : index
    %17 = vector.load %arg10[%c0_12, %c0_13] : memref<1x32xf32, #tpu.memory_space<vmem>>, vector<1x32xf32>
    %18 = vector.broadcast %17 : vector<1x32xf32> to vector<16x32xf32>
    %19 = arith.addf %16, %18 : vector<16x32xf32>
    %c0_14 = arith.constant 0 : index
    %c0_15 = arith.constant 0 : index
    %20 = vector.load %arg6[%c0_14, %c0_15] : memref<8x256xf32, #tpu.memory_space<vmem>>, vector<8x256xf32>
    %c0_16 = arith.constant 0 : index
    %c0_17 = arith.constant 0 : index
    %21 = vector.load %arg7[%c0_16, %c0_17] : memref<256x32xf32, #tpu.memory_space<vmem>>, vector<256x32xf32>
    %cst_18 = arith.constant dense<0.000000e+00> : vector<8x32xf32>
    %22 = tpu.matmul %20, %21, %cst_18 {dimension_numbers = #tpu.dot_dimension_numbers<[1], [0], [0], [1], [0, 0, 1, 1], [], []>} : vector<8x256xf32>, vector<256x32xf32>, vector<8x32xf32> -> vector<8x32xf32>
    %c0_19 = arith.constant 0 : index
    %c0_20 = arith.constant 0 : index
    %23 = vector.load %arg8[%c0_19, %c0_20] : memref<1x32xf32, #tpu.memory_space<vmem>>, vector<1x32xf32>
    %24 = vector.broadcast %23 : vector<1x32xf32> to vector<8x32xf32>
    %25 = arith.addf %22, %24 : vector<8x32xf32>
    %cst_21 = arith.constant 0.000000e+00 : f32
    %26 = vector.broadcast %cst_21 : f32 to vector<8x32xf32>
    %27 = arith.maximumf %25, %26 : vector<8x32xf32>
    %c0_22 = arith.constant 0 : index
    %c0_23 = arith.constant 0 : index
    %28 = vector.load %arg11[%c0_22, %c0_23] : memref<32x32xf32, #tpu.memory_space<vmem>>, vector<32x32xf32>
    %cst_24 = arith.constant dense<0.000000e+00> : vector<8x32xf32>
    %29 = tpu.matmul %27, %28, %cst_24 {dimension_numbers = #tpu.dot_dimension_numbers<[1], [0], [0], [1], [0, 0, 1, 1], [], []>} : vector<8x32xf32>, vector<32x32xf32>, vector<8x32xf32> -> vector<8x32xf32>
    %c0_25 = arith.constant 0 : index
    %c0_26 = arith.constant 0 : index
    %30 = vector.load %arg12[%c0_25, %c0_26] : memref<1x32xf32, #tpu.memory_space<vmem>>, vector<1x32xf32>
    %31 = vector.broadcast %30 : vector<1x32xf32> to vector<8x32xf32>
    %32 = arith.addf %29, %31 : vector<8x32xf32>
    %c0_27 = arith.constant 0 : index
    %c0_28 = arith.constant 0 : index
    %33 = vector.load %arg13[%c0_27, %c0_28] : memref<32x64xf32, #tpu.memory_space<vmem>>, vector<32x64xf32>
    %c0_29 = arith.constant 0 : index
    %c0_30 = arith.constant 0 : index
    %34 = vector.load %arg15[%c0_29, %c0_30] : memref<32x4xf32, #tpu.memory_space<vmem>>, vector<32x4xf32>
    %c0_31 = arith.constant 0 : index
    %c0_32 = arith.constant 0 : index
    %35 = vector.load %arg16[%c0_31, %c0_32] : memref<4x64xf32, #tpu.memory_space<vmem>>, vector<4x64xf32>
    %cst_33 = arith.constant dense<0.000000e+00> : vector<32x64xf32>
    %36 = tpu.matmul %34, %35, %cst_33 {dimension_numbers = #tpu.dot_dimension_numbers<[1], [0], [0], [1], [0, 0, 1, 1], [], []>} : vector<32x4xf32>, vector<4x64xf32>, vector<32x64xf32> -> vector<32x64xf32>
    %37 = arith.addf %33, %36 : vector<32x64xf32>
    %cst_34 = arith.constant dense<0.000000e+00> : vector<16x64xf32>
    %38 = tpu.matmul %19, %37, %cst_34 {dimension_numbers = #tpu.dot_dimension_numbers<[1], [0], [0], [1], [0, 0, 1, 1], [], []>} : vector<16x32xf32>, vector<32x64xf32>, vector<16x64xf32> -> vector<16x64xf32>
    %c0_35 = arith.constant 0 : index
    %c0_36 = arith.constant 0 : index
    %39 = vector.load %arg14[%c0_35, %c0_36] : memref<1x64xf32, #tpu.memory_space<vmem>>, vector<1x64xf32>
    %40 = vector.broadcast %39 : vector<1x64xf32> to vector<16x64xf32>
    %41 = arith.addf %38, %40 : vector<16x64xf32>
    %cst_37 = arith.constant dense<0.000000e+00> : vector<8x64xf32>
    %42 = tpu.matmul %32, %37, %cst_37 {dimension_numbers = #tpu.dot_dimension_numbers<[1], [0], [0], [1], [0, 0, 1, 1], [], []>} : vector<8x32xf32>, vector<32x64xf32>, vector<8x64xf32> -> vector<8x64xf32>
    %c0_38 = arith.constant 0 : index
    %c0_39 = arith.constant 0 : index
    %43 = vector.load %arg14[%c0_38, %c0_39] : memref<1x64xf32, #tpu.memory_space<vmem>>, vector<1x64xf32>
    %44 = vector.broadcast %43 : vector<1x64xf32> to vector<8x64xf32>
    %45 = arith.addf %42, %44 : vector<8x64xf32>
    %46 = vector.extract_strided_slice %41 {offsets = [0, 0], sizes = [8, 64], strides = [1, 1]} : vector<16x64xf32> to vector<8x64xf32>
    %c0_40 = arith.constant 0 : index
    %c0_41 = arith.constant 0 : index
    %47 = vector.load %arg17[%c0_40, %c0_41] : memref<24x64xf32, #tpu.memory_space<vmem>>, vector<8x64xf32>
    tpu.vector_store %arg17[%c0_40, %c0_41], %46 {strides = array<i32>} : memref<24x64xf32, #tpu.memory_space<vmem>>, vector<8x64xf32>,
    %48 = vector.extract_strided_slice %45 {offsets = [0, 0], sizes = [4, 64], strides = [1, 1]} : vector<8x64xf32> to vector<4x64xf32>
    %c8 = arith.constant 8 : index
    %c0_42 = arith.constant 0 : index
    %49 = vector.load %arg17[%c8, %c0_42] : memref<24x64xf32, #tpu.memory_space<vmem>>, vector<4x64xf32>
    tpu.vector_store %arg17[%c8, %c0_42], %48 {strides = array<i32>} : memref<24x64xf32, #tpu.memory_space<vmem>>, vector<4x64xf32>,
    %50 = vector.extract_strided_slice %41 {offsets = [8, 0], sizes = [8, 64], strides = [1, 1]} : vector<16x64xf32> to vector<8x64xf32>
    %c12 = arith.constant 12 : index
    %c0_43 = arith.constant 0 : index
    %51 = vector.load %arg17[%c12, %c0_43] : memref<24x64xf32, #tpu.memory_space<vmem>>, vector<8x64xf32>
    tpu.vector_store %arg17[%c12, %c0_43], %50 {strides = array<i32>} : memref<24x64xf32, #tpu.memory_space<vmem>>, vector<8x64xf32>,
    %52 = vector.extract_strided_slice %45 {offsets = [4, 0], sizes = [4, 64], strides = [1, 1]} : vector<8x64xf32> to vector<4x64xf32>
    %c20 = arith.constant 20 : index
    %c0_44 = arith.constant 0 : index
    %53 = vector.load %arg17[%c20, %c0_44] : memref<24x64xf32, #tpu.memory_space<vmem>>, vector<4x64xf32>
    tpu.vector_store %arg17[%c20, %c0_44], %52 {strides = array<i32>} : memref<24x64xf32, #tpu.memory_space<vmem>>, vector<4x64xf32>,
    %c0_45 = arith.constant 0 : index
    %c0_46 = arith.constant 0 : index
    %54 = vector.load %arg17[%c0_45, %c0_46] : memref<24x64xf32, #tpu.memory_space<vmem>>, vector<24x64xf32>
    %cst_47 = arith.constant dense<0xFF800000> : vector<24xf32>
    %55 = vector.multi_reduction <maximumf>, %54, %cst_47 [1] : vector<24x64xf32> to vector<24xf32>
    %56 = vector.shape_cast %55 : vector<24xf32> to vector<24x1xf32>
    %57 = vector.broadcast %56 : vector<24x1xf32> to vector<24x64xf32>
    %58 = arith.subf %54, %57 : vector<24x64xf32>
    %59 = math.exp %58 : vector<24x64xf32>
    %cst_48 = arith.constant dense<0.000000e+00> : vector<24xf32>
    %60 = vector.multi_reduction <add>, %59, %cst_48 [1] : vector<24x64xf32> to vector<24xf32>
    %61 = vector.shape_cast %60 : vector<24xf32> to vector<24x1xf32>
    %62 = math.log %61 : vector<24x1xf32>
    %63 = arith.addf %56, %62 : vector<24x1xf32>
    %64 = tpu.iota {dimensions = array<i32: 1>} : vector<24x64xi32>
    %c0_49 = arith.constant 0 : index
    %c0_50 = arith.constant 0 : index
    %65 = vector.load %arg2[%c0_49, %c0_50] : memref<24x1xi32, #tpu.memory_space<vmem>>, vector<24x1xi32>
    %66 = vector.broadcast %65 : vector<24x1xi32> to vector<24x64xi32>
    %67 = arith.cmpi eq, %64, %66 : vector<24x64xi32>
    %cst_51 = arith.constant 0.000000e+00 : f32
    %68 = vector.broadcast %cst_51 : f32 to vector<24x64xf32>
    %69 = arith.select %67, %54, %68 : vector<24x64xi1>, vector<24x64xf32>
    %cst_52 = arith.constant dense<0.000000e+00> : vector<24xf32>
    %70 = vector.multi_reduction <add>, %69, %cst_52 [1] : vector<24x64xf32> to vector<24xf32>
    %71 = vector.shape_cast %70 : vector<24xf32> to vector<24x1xf32>
    %72 = arith.subf %63, %71 : vector<24x1xf32>
    %c0_53 = arith.constant 0 : index
    %c0_54 = arith.constant 0 : index
    %73 = vector.load %arg1[%c0_53, %c0_54] : memref<24x1xf32, #tpu.memory_space<vmem>>, vector<24x1xf32>
    %74 = arith.mulf %72, %73 : vector<24x1xf32>
    %75 = vector.shape_cast %74 : vector<24x1xf32> to vector<1x24x1xf32>
    %cst_55 = arith.constant dense<0.000000e+00> : vector<1xf32>
    %76 = vector.multi_reduction <add>, %75, %cst_55 [1, 2] : vector<1x24x1xf32> to vector<1xf32>
    %77 = vector.shape_cast %76 : vector<1xf32> to vector<1x1x1xf32>
    %78 = vector.extract %77[0, 0, 0] : f32 from vector<1x1x1xf32>
    %79 = vector.shape_cast %73 : vector<24x1xf32> to vector<1x24x1xf32>
    %cst_56 = arith.constant dense<0.000000e+00> : vector<1xf32>
    %80 = vector.multi_reduction <add>, %79, %cst_56 [1, 2] : vector<1x24x1xf32> to vector<1xf32>
    %81 = vector.shape_cast %80 : vector<1xf32> to vector<1x1x1xf32>
    %82 = vector.extract %81[0, 0, 0] : f32 from vector<1x1x1xf32>
    %cst_57 = arith.constant 1.000000e+00 : f32
    %83 = arith.maximumf %82, %cst_57 : f32
    %84 = arith.divf %78, %83 : f32
    %c0_58 = arith.constant 0 : index
    %c0_59 = arith.constant 0 : index
    %85 = memref.load %arg18[%c0_58, %c0_59] : memref<1x1xf32, #tpu.memory_space<smem>>
    memref.store %84, %arg18[%c0_58, %c0_59] : memref<1x1xf32, #tpu.memory_space<smem>>
    return
  }
}

</mosaic_0001>

<llo_original>
// kernel: multimodal_forward.1
$region0: #{multimodal_forward.1}
  #allocation0 [shape = 'u32[]', space=smem, size = 0x4, offset = 0x4, fixed_abs, tag = 'smem constant byte address 0x4 - core index']
  #allocation1 [shape = 'u32[72,128]{1,0:T(1,128)}', space=vmem, size = 0x9000, scoped, tag = 'internal scratch']
  %s0 = inlined_call_operand.vmem [shape: s32[16,1], index: 0, kind: input, shape index: {}]
  %s1 = inlined_call_operand.vmem [shape: f32[24,1], index: 1, kind: input, shape index: {}]
  %s2 = inlined_call_operand.vmem [shape: s32[24,1], index: 2, kind: input, shape index: {}]
  %s3 = inlined_call_operand.vmem [shape: f32[64,32], index: 3, kind: input, shape index: {}]
  %s4 = inlined_call_operand.vmem [shape: f32[32,32], index: 4, kind: input, shape index: {}]
  %s5 = inlined_call_operand.vmem [shape: f32[1,32], index: 5, kind: input, shape index: {}]
  %s6 = inlined_call_operand.vmem [shape: f32[8,256], index: 6, kind: input, shape index: {}]
  %s7 = inlined_call_operand.vmem [shape: f32[256,32], index: 7, kind: input, shape index: {}]
  %s8 = inlined_call_operand.vmem [shape: f32[1,32], index: 8, kind: input, shape index: {}]
  %s9 = inlined_call_operand.vmem [shape: f32[32,32], index: 9, kind: input, shape index: {}]
  %s10 = inlined_call_operand.vmem [shape: f32[1,32], index: 10, kind: input, shape index: {}]
  %s11 = inlined_call_operand.vmem [shape: f32[32,32], index: 11, kind: input, shape index: {}]
  %s12 = inlined_call_operand.vmem [shape: f32[1,32], index: 12, kind: input, shape index: {}]
  %s13 = inlined_call_operand.vmem [shape: f32[32,64], index: 13, kind: input, shape index: {}]
  %s14 = inlined_call_operand.vmem [shape: f32[1,64], index: 14, kind: input, shape index: {}]
  %s15 = inlined_call_operand.vmem [shape: f32[32,4], index: 15, kind: input, shape index: {}]
  %s16 = inlined_call_operand.vmem [shape: f32[4,64], index: 16, kind: input, shape index: {}]
  %s17 = inlined_call_operand.vmem [shape: f32[24,64], index: 17, kind: output, shape index: {0}]
  %s18 = inlined_call_operand.hbm [shape: f32[1,1], index: 18, kind: output, shape index: {1}]
  %19 = xla_tuple %s17, %s18
  %s20 = sld [smem:[#allocation0]]
  $region86: #{multimodal_forward.1} parent=0
    _
  %s22 = ssub.s32 1, %s20
  %s23 = scalar_select 0, %s22, %s20
  $region1: #{multimodal_forward.1} parent=0
    #allocation2 [shape = 'u8[512]{0}', space=smem, size = 0x200, scoped, tag = 'output window, operand 1, single buffered']
    #allocation3 [shape = 's32[1]{0}', space=sflag, size = 0x4, scoped, tag = 'scoped memory for multimodal_forward.1']
    %24 = vsyncpa [#allocation3], 0
    // Predicated region
    $region2: #{multimodal_forward.1} parent=1 // pred_check
      _
    $region3: #{multimodal_forward.1} parent=1 // pred_check_branch
      %26 = sbr.rel (0) target = $region5
    $region4: #{multimodal_forward.1} parent=1 // pred_region
      _
    $region5: #{multimodal_forward.1} parent=1 // pred_fallthru
      _
    // Predicated region
    $region6: #{multimodal_forward.1} parent=1 // pred_check
      _
    $region7: #{multimodal_forward.1} parent=1 // pred_check_branch
      %28 = sbr.rel (0) target = $region9
    $region8: #{multimodal_forward.1} parent=1 // pred_region
      _
    $region9: #{multimodal_forward.1} parent=1 // pred_fallthru
      _
    // Predicated region
    $region10: #{multimodal_forward.1} parent=1 // pred_check
      _
    $region11: #{multimodal_forward.1} parent=1 // pred_check_branch
      %30 = sbr.rel (0) target = $region13
    $region12: #{multimodal_forward.1} parent=1 // pred_region
      _
    $region13: #{multimodal_forward.1} parent=1 // pred_fallthru
      _
    // Predicated region
    $region14: #{multimodal_forward.1} parent=1 // pred_check
      _
    $region15: #{multimodal_forward.1} parent=1 // pred_check_branch
      %32 = sbr.rel (0) target = $region17
    $region16: #{multimodal_forward.1} parent=1 // pred_region
      _
    $region17: #{multimodal_forward.1} parent=1 // pred_fallthru
      _
    // Predicated region
    $region18: #{multimodal_forward.1} parent=1 // pred_check
      _
    $region19: #{multimodal_forward.1} parent=1 // pred_check_branch
      %34 = sbr.rel (0) target = $region21
    $region20: #{multimodal_forward.1} parent=1 // pred_region
      _
    $region21: #{multimodal_forward.1} parent=1 // pred_fallthru
      _
    // Predicated region
    $region22: #{multimodal_forward.1} parent=1 // pred_check
      _
    $region23: #{multimodal_forward.1} parent=1 // pred_check_branch
      %36 = sbr.rel (0) target = $region25
    $region24: #{multimodal_forward.1} parent=1 // pred_region
      _
    $region25: #{multimodal_forward.1} parent=1 // pred_fallthru
      _
    // Predicated region
    $region26: #{multimodal_forward.1} parent=1 // pred_check
      _
    $region27: #{multimodal_forward.1} parent=1 // pred_check_branch
      %38 = sbr.rel (0) target = $region29
    $region28: #{multimodal_forward.1} parent=1 // pred_region
      _
    $region29: #{multimodal_forward.1} parent=1 // pred_fallthru
      _
    // Predicated region
    $region30: #{multimodal_forward.1} parent=1 // pred_check
      _
    $region31: #{multimodal_forward.1} parent=1 // pred_check_branch
      %40 = sbr.rel (0) target = $region33
    $region32: #{multimodal_forward.1} parent=1 // pred_region
      _
    $region33: #{multimodal_forward.1} parent=1 // pred_fallthru
      _
    // Predicated region
    $region34: #{multimodal_forward.1} parent=1 // pred_check
      _
    $region35: #{multimodal_forward.1} parent=1 // pred_check_branch
      %42 = sbr.rel (0) target = $region37
    $region36: #{multimodal_forward.1} parent=1 // pred_region
      _
    $region37: #{multimodal_forward.1} parent=1 // pred_fallthru
      _
    // Predicated region
    $region38: #{multimodal_forward.1} parent=1 // pred_check
      _
    $region39: #{multimodal_forward.1} parent=1 // pred_check_branch
      %44 = sbr.rel (0) target = $region41
    $region40: #{multimodal_forward.1} parent=1 // pred_region
      _
    $region41: #{multimodal_forward.1} parent=1 // pred_fallthru
      _
    // Predicated region
    $region42: #{multimodal_forward.1} parent=1 // pred_check
      _
    $region43: #{multimodal_forward.1} parent=1 // pred_check_branch
      %46 = sbr.rel (0) target = $region45
    $region44: #{multimodal_forward.1} parent=1 // pred_region
      _
    $region45: #{multimodal_forward.1} parent=1 // pred_fallthru
      _
    // Predicated region
    $region46: #{multimodal_forward.1} parent=1 // pred_check
      _
    $region47: #{multimodal_forward.1} parent=1 // pred_check_branch
      %48 = sbr.rel (0) target = $region49
    $region48: #{multimodal_forward.1} parent=1 // pred_region
      _
    $region49: #{multimodal_forward.1} parent=1 // pred_fallthru
      _
    // Predicated region
    $region50: #{multimodal_forward.1} parent=1 // pred_check
      _
    $region51: #{multimodal_forward.1} parent=1 // pred_check_branch
      %50 = sbr.rel (0) target = $region53
    $region52: #{multimodal_forward.1} parent=1 // pred_region
      _
    $region53: #{multimodal_forward.1} parent=1 // pred_fallthru
      _
    // Predicated region
    $region54: #{multimodal_forward.1} parent=1 // pred_check
      _
    $region55: #{multimodal_forward.1} parent=1 // pred_check_branch
      %52 = sbr.rel (0) target = $region57
    $region56: #{multimodal_forward.1} parent=1 // pred_region
      _
    $region57: #{multimodal_forward.1} parent=1 // pred_fallthru
      _
    // Predicated region
    $region58: #{multimodal_forward.1} parent=1 // pred_check
      _
    $region59: #{multimodal_forward.1} parent=1 // pred_check_branch
      %54 = sbr.rel (0) target = $region61
    $region60: #{multimodal_forward.1} parent=1 // pred_region
      _
    $region61: #{multimodal_forward.1} parent=1 // pred_fallthru
      _
    // Predicated region
    $region62: #{multimodal_forward.1} parent=1 // pred_check
      _
    $region63: #{multimodal_forward.1} parent=1 // pred_check_branch
      %56 = sbr.rel (0) target = $region65
    $region64: #{multimodal_forward.1} parent=1 // pred_region
      _
    $region65: #{multimodal_forward.1} parent=1 // pred_fallthru
      _
    // Predicated region
    $region66: #{multimodal_forward.1} parent=1 // pred_check
      _
    $region67: #{multimodal_forward.1} parent=1 // pred_check_branch
      %58 = sbr.rel (0) target = $region69
    $region68: #{multimodal_forward.1} parent=1 // pred_region
      _
    $region69: #{multimodal_forward.1} parent=1 // pred_fallthru
      _
    %v59 = vld [vmem:[%s0] sm:$0xff]
    %v60 = vld [vmem:[%s0 + $0x8] sm:$0xff]
    %v61 = vlaneseq
    %v62 = vand.u32 %v61, 127
    %63 = vset.pattern.permute.xlu0 0
    %64 = vperm.xlu0 %63, %v59
    %v65 = vpop.permute.xlu0 %64
    %66 = vset.pattern.permute.xlu0 0
    %67 = vperm.xlu0 %66, %v60
    %v68 = vpop.permute.xlu0 %67
    %vm69 = vcmp.eq.s32.totalorder %v62, %v65
    %vm70 = vcmp.eq.s32.totalorder %v62, %v68
    %v71 = vsel %vm69, 1, 0
    %v72 = vsel %vm70, 1, 0
    %v73 = vcvt.s32.f32 %v71
    %v74 = vcvt.s32.f32 %v72
    %v75 = vld [vmem:[%s3] sm:$0xff]
    %v76 = vld [vmem:[%s3 + $0x8] sm:$0xff]
    %v77 = vld [vmem:[%s3 + $0x10] sm:$0xff]
    %v78 = vld [vmem:[%s3 + $0x18] sm:$0xff]
    %v79 = vld [vmem:[%s3 + $0x20] sm:$0xff]
    %v80 = vld [vmem:[%s3 + $0x28] sm:$0xff]
    %v81 = vld [vmem:[%s3 + $0x30] sm:$0xff]
    %v82 = vld [vmem:[%s3 + $0x38] sm:$0xff]
    %vm83 = vcmask 523264
    %v85 = vsel %vm83, %v73, 0
    %v88 = vsel %vm83, %v74, 0
    %90 = vmatpush.msra.mxu0 0.0
    %91 = vmatpush.msra.mxu0 0.0
    %92 = vmatpush.msra.mxu0 0.0
    %93 = vmatpush.msra.mxu0 0.0
    %94 = vmatpush.msra.mxu0 0.0
    %95 = vmatpush.msra.mxu0 0.0
    %96 = vmatpush.msra.mxu0 0.0
    %97 = vmatpush.msra.mxu0 0.0
    %98 = vmatpush.msra.mxu0 %v82
    %99 = vmatpush.msra.mxu0 %v81
    %100 = vmatpush.msra.mxu0 %v80
    %101 = vmatpush.msra.mxu0 %v79
    %102 = vmatpush.msra.mxu0 %v78
    %103 = vmatpush.msra.mxu0 %v77
    %104 = vmatpush.msra.mxu0 %v76
    %105 = vmatpush.msra.mxu0 %v75
    %106 = vmatmul.f32.gmra.mxu0 %v85
    %v107 = vpop.f32.mrf.mxu0
    %v108 = vadd.f32 0.0, %v107
    %109 = vmatmul.f32.gmra.mxu0 %v88
    %v110 = vpop.f32.mrf.mxu0
    %v111 = vadd.f32 0.0, %v110
    %112 = vdwg.mxu0
    %v113 = vld [vmem:[%s4] sm:$0xff]
    %v114 = vld [vmem:[%s4 + $0x8] sm:$0xff]
    %v115 = vld [vmem:[%s4 + $0x10] sm:$0xff]
    %v116 = vld [vmem:[%s4 + $0x18] sm:$0xff]
    %v117 = vld [vmem:[%s5] sm:$0x1]
    %v119 = vperm.slane %v117, 0
    %vm121 = vcmask 261120
    %v123 = vsel %vm121, %v108, 0
    %v126 = vsel %vm121, %v111, 0
    %128 = vmatpush.msra.mxu0 0.0
    %129 = vmatpush.msra.mxu0 0.0
    %130 = vmatpush.msra.mxu0 0.0
    %131 = vmatpush.msra.mxu0 0.0
    %132 = vmatpush.msra.mxu0 0.0
    %133 = vmatpush.msra.mxu0 0.0
    %134 = vmatpush.msra.mxu0 0.0
    %135 = vmatpush.msra.mxu0 0.0
    %136 = vmatpush.msra.mxu0 0.0
    %137 = vmatpush.msra.mxu0 0.0
    %138 = vmatpush.msra.mxu0 0.0
    %139 = vmatpush.msra.mxu0 0.0
    %140 = vmatpush.msra.mxu0 %v116
    %141 = vmatpush.msra.mxu0 %v115
    %142 = vmatpush.msra.mxu0 %v114
    %143 = vmatpush.msra.mxu0 %v113
    %144 = vmatmul.f32.gmra.mxu0 %v123
    %v145 = vpop.f32.mrf.mxu0
    %v146 = vadd.f32 %v119, %v145
    %147 = vmatmul.f32.gmra.mxu0 %v126
    %v148 = vpop.f32.mrf.mxu0
    %v149 = vadd.f32 %v119, %v148
    %150 = vdwg.mxu0
    %v151 = vmax.f32 %v146, 0.0
    %v152 = vmax.f32 %v149, 0.0
    %v153 = vld [vmem:[%s9] sm:$0xff]
    %v154 = vld [vmem:[%s9 + $0x8] sm:$0xff]
    %v155 = vld [vmem:[%s9 + $0x10] sm:$0xff]
    %v156 = vld [vmem:[%s9 + $0x18] sm:$0xff]
    %v157 = vld [vmem:[%s10] sm:$0x1]
    %v159 = vperm.slane %v157, 0
    %v162 = vsel %vm121, %v151, 0
    %v165 = vsel %vm121, %v152, 0
    %167 = vmatpush.msra.mxu0 0.0
    %168 = vmatpush.msra.mxu0 0.0
    %169 = vmatpush.msra.mxu0 0.0
    %170 = vmatpush.msra.mxu0 0.0
    %171 = vmatpush.msra.mxu0 0.0
    %172 = vmatpush.msra.mxu0 0.0
    %173 = vmatpush.msra.mxu0 0.0
    %174 = vmatpush.msra.mxu0 0.0
    %175 = vmatpush.msra.mxu0 0.0
    %176 = vmatpush.msra.mxu0 0.0
    %177 = vmatpush.msra.mxu0 0.0
    %178 = vmatpush.msra.mxu0 0.0
    %179 = vmatpush.msra.mxu0 %v156
    %180 = vmatpush.msra.mxu0 %v155
    %181 = vmatpush.msra.mxu0 %v154
    %182 = vmatpush.msra.mxu0 %v153
    %183 = vmatmul.f32.gmra.mxu0 %v162
    %v184 = vpop.f32.mrf.mxu0
    %v185 = vadd.f32 %v159, %v184
    %186 = vmatmul.f32.gmra.mxu0 %v165
    %v187 = vpop.f32.mrf.mxu0
    %v188 = vadd.f32 %v159, %v187
    %189 = vdwg.mxu0
    %v190 = vld [vmem:[%s6] sm:$0xff]
    %v191 = vld [vmem:[%s6 + $0x8] sm:$0xff]
    %v192 = vld [vmem:[%s7] sm:$0xff]
    %v193 = vld [vmem:[%s7 + $0x8] sm:$0xff]
    %v194 = vld [vmem:[%s7 + $0x10] sm:$0xff]
    %v195 = vld [vmem:[%s7 + $0x18] sm:$0xff]
    %v196 = vld [vmem:[%s7 + $0x20] sm:$0xff]
    %v197 = vld [vmem:[%s7 + $0x28] sm:$0xff]
    %v198 = vld [vmem:[%s7 + $0x30] sm:$0xff]
    %v199 = vld [vmem:[%s7 + $0x38] sm:$0xff]
    %v200 = vld [vmem:[%s7 + $0x40] sm:$0xff]
    %v201 = vld [vmem:[%s7 + $0x48] sm:$0xff]
    %v202 = vld [vmem:[%s7 + $0x50] sm:$0xff]
    %v203 = vld [vmem:[%s7 + $0x58] sm:$0xff]
    %v204 = vld [vmem:[%s7 + $0x60] sm:$0xff]
    %v205 = vld [vmem:[%s7 + $0x68] sm:$0xff]
    %v206 = vld [vmem:[%s7 + $0x70] sm:$0xff]
    %v207 = vld [vmem:[%s7 + $0x78] sm:$0xff]
    %v208 = vld [vmem:[%s7 + $0x80] sm:$0xff]
    %v209 = vld [vmem:[%s7 + $0x88] sm:$0xff]
    %v210 = vld [vmem:[%s7 + $0x90] sm:$0xff]
    %v211 = vld [vmem:[%s7 + $0x98] sm:$0xff]
    %v212 = vld [vmem:[%s7 + $0xa0] sm:$0xff]
    %v213 = vld [vmem:[%s7 + $0xa8] sm:$0xff]
    %v214 = vld [vmem:[%s7 + $0xb0] sm:$0xff]
    %v215 = vld [vmem:[%s7 + $0xb8] sm:$0xff]
    %v216 = vld [vmem:[%s7 + $0xc0] sm:$0xff]
    %v217 = vld [vmem:[%s7 + $0xc8] sm:$0xff]
    %v218 = vld [vmem:[%s7 + $0xd0] sm:$0xff]
    %v219 = vld [vmem:[%s7 + $0xd8] sm:$0xff]
    %v220 = vld [vmem:[%s7 + $0xe0] sm:$0xff]
    %v221 = vld [vmem:[%s7 + $0xe8] sm:$0xff]
    %v222 = vld [vmem:[%s7 + $0xf0] sm:$0xff]
    %v223 = vld [vmem:[%s7 + $0xf8] sm:$0xff]
    %v224 = vld [vmem:[%s8] sm:$0x1]
    %v226 = vperm.slane %v224, 0
    %228 = vmatpush.msra.mxu0 %v207
    %229 = vmatpush.msra.mxu0 %v206
    %230 = vmatpush.msra.mxu0 %v205
    %231 = vmatpush.msra.mxu0 %v204
    %232 = vmatpush.msra.mxu0 %v203
    %233 = vmatpush.msra.mxu0 %v202
    %234 = vmatpush.msra.mxu0 %v201
    %235 = vmatpush.msra.mxu0 %v200
    %236 = vmatpush.msra.mxu0 %v199
    %237 = vmatpush.msra.mxu0 %v198
    %238 = vmatpush.msra.mxu0 %v197
    %239 = vmatpush.msra.mxu0 %v196
    %240 = vmatpush.msra.mxu0 %v195
    %241 = vmatpush.msra.mxu0 %v194
    %242 = vmatpush.msra.mxu0 %v193
    %243 = vmatpush.msra.mxu0 %v192
    %244 = vmatmul.f32.gmra.mxu0 %v190
    %v245 = vpop.f32.mrf.mxu0
    %v246 = vadd.f32 %v226, %v245
    %247 = vdwg.mxu0
    %248 = vmatpush.msra.mxu0 %v223
    %249 = vmatpush.msra.mxu0 %v222
    %250 = vmatpush.msra.mxu0 %v221
    %251 = vmatpush.msra.mxu0 %v220
    %252 = vmatpush.msra.mxu0 %v219
    %253 = vmatpush.msra.mxu0 %v218
    %254 = vmatpush.msra.mxu0 %v217
    %255 = vmatpush.msra.mxu0 %v216
    %256 = vmatpush.msra.mxu0 %v215
    %257 = vmatpush.msra.mxu0 %v214
    %258 = vmatpush.msra.mxu0 %v213
    %259 = vmatpush.msra.mxu0 %v212
    %260 = vmatpush.msra.mxu0 %v211
    %261 = vmatpush.msra.mxu0 %v210
    %262 = vmatpush.msra.mxu0 %v209
    %263 = vmatpush.msra.mxu0 %v208
    %264 = vmatmul.f32.gmra.mxu0 %v191
    %v265 = vpop.f32.mrf.mxu0
    %v266 = vadd.f32 %v246, %v265
    %267 = vdwg.mxu0
    %v268 = vmax.f32 %v266, 0.0
    %v269 = vld [vmem:[%s11] sm:$0xff]
    %v270 = vld [vmem:[%s11 + $0x8] sm:$0xff]
    %v271 = vld [vmem:[%s11 + $0x10] sm:$0xff]
    %v272 = vld [vmem:[%s11 + $0x18] sm:$0xff]
    %v273 = vld [vmem:[%s12] sm:$0x1]
    %v275 = vperm.slane %v273, 0
    %v278 = vsel %vm121, %v268, 0
    %280 = vmatpush.msra.mxu0 0.0
    %281 = vmatpush.msra.mxu0 0.0
    %282 = vmatpush.msra.mxu0 0.0
    %283 = vmatpush.msra.mxu0 0.0
    %284 = vmatpush.msra.mxu0 0.0
    %285 = vmatpush.msra.mxu0 0.0
    %286 = vmatpush.msra.mxu0 0.0
    %287 = vmatpush.msra.mxu0 0.0
    %288 = vmatpush.msra.mxu0 0.0
    %289 = vmatpush.msra.mxu0 0.0
    %290 = vmatpush.msra.mxu0 0.0
    %291 = vmatpush.msra.mxu0 0.0
    %292 = vmatpush.msra.mxu0 %v272
    %293 = vmatpush.msra.mxu0 %v271
    %294 = vmatpush.msra.mxu0 %v270
    %295 = vmatpush.msra.mxu0 %v269
    %296 = vmatmul.f32.gmra.mxu0 %v278
    %v297 = vpop.f32.mrf.mxu0
    %v298 = vadd.f32 %v275, %v297
    %299 = vdwg.mxu0
    %v300 = vld [vmem:[%s13] sm:$0xff]
    %v301 = vld [vmem:[%s13 + $0x8] sm:$0xff]
    %v302 = vld [vmem:[%s13 + $0x10] sm:$0xff]
    %v303 = vld [vmem:[%s13 + $0x18] sm:$0xff]
    %v304 = vld [vmem:[%s15] sm:$0xff]
    %v305 = vld [vmem:[%s15 + $0x8] sm:$0xff]
    %v306 = vld [vmem:[%s15 + $0x10] sm:$0xff]
    %v307 = vld [vmem:[%s15 + $0x18] sm:$0xff]
    %v308 = vld [vmem:[%s16] sm:$0xf]
    %vm309 = vcmask 31744
    %v311 = vsel %vm309, %v304, 0
    %v314 = vsel %vm309, %v305, 0
    %v317 = vsel %vm309, %v306, 0
    %v320 = vsel %vm309, %v307, 0
    %vm322 = vcmask 1043456
    %v324 = vsel %vm322, %v308, 0
    %326 = vmatpush.msra.mxu0 0.0
    %327 = vmatpush.msra.mxu0 0.0
    %328 = vmatpush.msra.mxu0 0.0
    %329 = vmatpush.msra.mxu0 0.0
    %330 = vmatpush.msra.mxu0 0.0
    %331 = vmatpush.msra.mxu0 0.0
    %332 = vmatpush.msra.mxu0 0.0
    %333 = vmatpush.msra.mxu0 0.0
    %334 = vmatpush.msra.mxu0 0.0
    %335 = vmatpush.msra.mxu0 0.0
    %336 = vmatpush.msra.mxu0 0.0
    %337 = vmatpush.msra.mxu0 0.0
    %338 = vmatpush.msra.mxu0 0.0
    %339 = vmatpush.msra.mxu0 0.0
    %340 = vmatpush.msra.mxu0 0.0
    %341 = vmatpush.msra.mxu0 %v324
    %342 = vmatmul.f32.gmra.mxu0 %v311
    %v343 = vpop.f32.mrf.mxu0
    %v344 = vadd.f32 0.0, %v343
    %345 = vmatmul.f32.gmra.mxu0 %v314
    %v346 = vpop.f32.mrf.mxu0
    %v347 = vadd.f32 0.0, %v346
    %348 = vmatmul.f32.gmra.mxu0 %v317
    %v349 = vpop.f32.mrf.mxu0
    %v350 = vadd.f32 0.0, %v349
    %351 = vmatmul.f32.gmra.mxu0 %v320
    %v352 = vpop.f32.mrf.mxu0
    %v353 = vadd.f32 0.0, %v352
    %354 = vdwg.mxu0
    %v355 = vadd.f32 %v300, %v344
    %v356 = vadd.f32 %v301, %v347
    %v357 = vadd.f32 %v302, %v350
    %v358 = vadd.f32 %v303, %v353
    %v359 = vld [vmem:[%s14] sm:$0x1]
    %v361 = vperm.slane %v359, 0
    %v364 = vsel %vm121, %v185, 0
    %v367 = vsel %vm121, %v188, 0
    %369 = vmatpush.msra.mxu0 0.0
    %370 = vmatpush.msra.mxu0 0.0
    %371 = vmatpush.msra.mxu0 0.0
    %372 = vmatpush.msra.mxu0 0.0
    %373 = vmatpush.msra.mxu0 0.0
    %374 = vmatpush.msra.mxu0 0.0
    %375 = vmatpush.msra.mxu0 0.0
    %376 = vmatpush.msra.mxu0 0.0
    %377 = vmatpush.msra.mxu0 0.0
    %378 = vmatpush.msra.mxu0 0.0
    %379 = vmatpush.msra.mxu0 0.0
    %380 = vmatpush.msra.mxu0 0.0
    %381 = vmatpush.msra.mxu0 %v358
    %382 = vmatpush.msra.mxu0 %v357
    %383 = vmatpush.msra.mxu0 %v356
    %384 = vmatpush.msra.mxu0 %v355
    %385 = vmatmul.f32.gmra.mxu0 %v364
    %v386 = vpop.f32.mrf.mxu0
    %v387 = vadd.f32 %v361, %v386
    %388 = vmatmul.f32.gmra.mxu0 %v367
    %v389 = vpop.f32.mrf.mxu0
    %v390 = vadd.f32 %v361, %v389
    %391 = vdwg.mxu0
    %v393 = vsel %vm121, %v298, 0
    %395 = vmatpush.msra.mxu0 0.0
    %396 = vmatpush.msra.mxu0 0.0
    %397 = vmatpush.msra.mxu0 0.0
    %398 = vmatpush.msra.mxu0 0.0
    %399 = vmatpush.msra.mxu0 0.0
    %400 = vmatpush.msra.mxu0 0.0
    %401 = vmatpush.msra.mxu0 0.0
    %402 = vmatpush.msra.mxu0 0.0
    %403 = vmatpush.msra.mxu0 0.0
    %404 = vmatpush.msra.mxu0 0.0
    %405 = vmatpush.msra.mxu0 0.0
    %406 = vmatpush.msra.mxu0 0.0
    %407 = vmatpush.msra.mxu0 %v358
    %408 = vmatpush.msra.mxu0 %v357
    %409 = vmatpush.msra.mxu0 %v356
    %410 = vmatpush.msra.mxu0 %v355
    %411 = vmatmul.f32.gmra.mxu0 %v393
    %v412 = vpop.f32.mrf.mxu0
    %v413 = vadd.f32 %v361, %v412
    %414 = vdwg.mxu0
    %415 = vst.msk [vmem:[%s17] sm:$0xff] %vm83, %v387
    %vm416 = vcmask 519168
    %417 = vst.msk [vmem:[%s17 + $0x8] sm:$0xf] %vm416, %v413
    %418 = vst.msk [vmem:[%s17 + $0xc] sm:$0xff] %vm83, %v390
    %vm419 = vcmask 523268
    %420 = vst.msk [vmem:[%s17 + $0x10] sm:$0xf0] %vm419, %v413
    %v421 = vld [vmem:[%s17] sm:$0xff]
    %v422 = vld [vmem:[%s17 + $0x8] sm:$0xff]
    %v423 = vld [vmem:[%s17 + $0x10] sm:$0xff]
    %v424 = vsel %vm83, %v421, -inf
    %425 = vmax.xlane.f32.xlu0 %v424
    %v426 = vpop.xlane.xlu0 %425
    %v427 = vsel %vm83, %v422, -inf
    %428 = vmax.xlane.f32.xlu0 %v427
    %v429 = vpop.xlane.xlu0 %428
    %v430 = vsel %vm83, %v423, -inf
    %431 = vmax.xlane.f32.xlu0 %v430
    %v432 = vpop.xlane.xlu0 %431
    %v433 = vsub.f32 %v421, %v426
    %v434 = vsub.f32 %v422, %v429
    %v435 = vsub.f32 %v423, %v432
    %v436 = vmul.f32 %v433, 1.442695
    %v437 = vpow.pop %v436
    %v438 = vmul.f32 %v434, 1.442695
    %v439 = vpow.pop %v438
    %v440 = vmul.f32 %v435, 1.442695
    %v441 = vpow.pop %v440
    %v442 = vsel %vm83, %v437, 0.0
    %443 = vadd.xlane.f32.xlu0 %v442
    %v444 = vpop.xlane.xlu0 %443
    %v445 = vsel %vm83, %v439, 0.0
    %446 = vadd.xlane.f32.xlu0 %v445
    %v447 = vpop.xlane.xlu0 %446
    %v448 = vsel %vm83, %v441, 0.0
    %449 = vadd.xlane.f32.xlu0 %v448
    %v450 = vpop.xlane.xlu0 %449
    %v451 = vlog2.pop %v444
    %v452 = vmul.f32 %v451, 0.6931472
    %v453 = vlog2.pop %v447
    %v454 = vmul.f32 %v453, 0.6931472
    %v455 = vlog2.pop %v450
    %v456 = vmul.f32 %v455, 0.6931472
    %v457 = vadd.f32 %v426, %v452
    %v458 = vadd.f32 %v429, %v454
    %v459 = vadd.f32 %v432, %v456
    %v460 = vld [vmem:[%s2] sm:$0xff]
    %v461 = vld [vmem:[%s2 + $0x8] sm:$0xff]
    %v462 = vld [vmem:[%s2 + $0x10] sm:$0xff]
    %463 = vset.pattern.permute.xlu0 0
    %464 = vperm.xlu0 %463, %v460
    %v465 = vpop.permute.xlu0 %464
    %466 = vset.pattern.permute.xlu0 0
    %467 = vperm.xlu0 %466, %v461
    %v468 = vpop.permute.xlu0 %467
    %469 = vset.pattern.permute.xlu0 0
    %470 = vperm.xlu0 %469, %v462
    %v471 = vpop.permute.xlu0 %470
    %vm472 = vcmp.eq.s32.totalorder %v62, %v465
    %vm473 = vcmp.eq.s32.totalorder %v62, %v468
    %vm474 = vcmp.eq.s32.totalorder %v62, %v471
    %v475 = vsel %vm472, %v421, 0.0
    %v476 = vsel %vm473, %v422, 0.0
    %v477 = vsel %vm474, %v423, 0.0
    %v478 = vsel %vm83, %v475, 0.0
    %479 = vadd.xlane.f32.xlu0 %v478
    %v480 = vpop.xlane.xlu0 %479
    %v481 = vsel %vm83, %v476, 0.0
    %482 = vadd.xlane.f32.xlu0 %v481
    %v483 = vpop.xlane.xlu0 %482
    %v484 = vsel %vm83, %v477, 0.0
    %485 = vadd.xlane.f32.xlu0 %v484
    %v486 = vpop.xlane.xlu0 %485
    %v487 = vsub.f32 %v457, %v480
    %v488 = vsub.f32 %v458, %v483
    %v489 = vsub.f32 %v459, %v486
    %v490 = vld [vmem:[%s1] sm:$0xff]
    %v491 = vld [vmem:[%s1 + $0x8] sm:$0xff]
    %v492 = vld [vmem:[%s1 + $0x10] sm:$0xff]
    %v493 = vmul.f32 %v487, %v490
    %v494 = vmul.f32 %v488, %v491
    %v495 = vmul.f32 %v489, %v492
    %vm496 = vcmask 7168
    %v497 = vsel %vm496, %v493, 0.0
    %v498 = vsel %vm496, %v494, 0.0
    %v499 = vadd.f32 %v497, %v498
    %v500 = vsel %vm496, %v495, 0.0
    %v501 = vadd.f32 %v499, %v500
    %502 = vadd.xlane.f32.xlu0 %v501
    %v503 = vpop.xlane.xlu0 %502
    %v504 = vrot.slane %v503, 4
    %v505 = vadd.f32 %v503, %v504
    %v506 = vrot.slane %v505, 2
    %v507 = vadd.f32 %v505, %v506
    %v508 = vrot.slane %v507, 1
    %v509 = vadd.f32 %v507, %v508
    %s510 = vtos %v509
    %v511 = vsel %vm496, %v490, 0.0
    %v512 = vsel %vm496, %v491, 0.0
    %v513 = vadd.f32 %v511, %v512
    %v514 = vsel %vm496, %v492, 0.0
    %v515 = vadd.f32 %v513, %v514
    %516 = vadd.xlane.f32.xlu0 %v515
    %v517 = vpop.xlane.xlu0 %516
    %v518 = vrot.slane %v517, 4
    %v519 = vadd.f32 %v517, %v518
    %v520 = vrot.slane %v519, 2
    %v521 = vadd.f32 %v519, %v520
    %v522 = vrot.slane %v521, 1
    %v523 = vadd.f32 %v521, %v522
    %s524 = vtos %v523
    %s525 = smax.f32 %s524, 1.0
    %v526 = vstv %s525
    %v527 = vrcp.pop %v526
    %v528 = vmul.f32 %v526, %v527
    %v529 = vsub.f32 1.0, %v528
    %v530 = vmul.f32 %v527, %v529
    %v531 = vadd.f32 %v527, %v530
    %vm532 = vweird.f32 %v526
    %vm533 = vweird.f32 %v527
    %vm534 = vmor %vm532, %vm533
    %v535 = vsel %vm534, %v527, %v531
    %v536 = vand.u32 2147483647, %v526
    %vm537 = vcmp.eq.f32.partialorder %v536, 8.507059e+37
    %v538 = vand.u32 %v526, 2147483648
    %v539 = vor.u32 1.1754944e-38, %v538
    %v540 = vsel %vm537, %v539, %v535
    %s541 = vtos %v540
    %s542 = smul.f32 %s510, %s541
    %s543 = scalar_lea.smem [#allocation2], 0
    %544 = sst [smem:[%s543]] %s542
    // Predicated region
    $region70: #{multimodal_forward.1} parent=1 // pred_check
      _
    $region71: #{multimodal_forward.1} parent=1 // pred_check_branch
      %546 = sbr.rel (0) target = $region73
    $region72: #{multimodal_forward.1} parent=1 // pred_region
      _
    $region73: #{multimodal_forward.1} parent=1 // pred_fallthru
      _
    // Predicated region
    $region74: #{multimodal_forward.1} parent=1 // pred_check
      _
    $region75: #{multimodal_forward.1} parent=1 // pred_check_branch
      %548 = sbr.rel (0) target = $region77
    $region76: #{multimodal_forward.1} parent=1 // pred_region
      %550 = vsyncadd [#allocation3], 0
      %s552 = sshll.u32 %s18, 4
      %s553 = int_to_ptr.hbm [resolvable:$true] %s552
      %555 = dma.smem_to_hbm [#allocation2], 16, %s553, [#allocation3]
    $region77: #{multimodal_forward.1} parent=1 // pred_fallthru
      _
    // Predicated region
    $region78: #{multimodal_forward.1} parent=1 // pred_check
      _
    $region79: #{multimodal_forward.1} parent=1 // pred_check_branch
      %557 = sbr.rel (0) target = $region81
    $region80: #{multimodal_forward.1} parent=1 // pred_region
      _
    $region81: #{multimodal_forward.1} parent=1 // pred_fallthru
      _
    // Predicated region
    $region82: #{multimodal_forward.1} parent=1 // pred_check
      _
    $region83: #{multimodal_forward.1} parent=1 // pred_check_branch
      %559 = sbr.rel (0) target = $region85
    $region84: #{multimodal_forward.1} parent=1 // pred_region
      %561 = dma.done [#allocation3], 16
    $region85: #{multimodal_forward.1} parent=1 // pred_fallthru
      _
    %562 = sfence
    %563 = vsyncpa [#allocation3], 1

</llo_original>
